<compile_context>
chip_gen: v7x
topology: tpu7x:2x2x1
jax: 0.10.0
libtpu: 0.0.40
codegen_flags: <defaults>
</compile_context>

<pallas_src>
import jax
import jax.numpy as jnp
from jax.experimental import pallas as pl
from jax.experimental.pallas import tpu as pltpu


def _conv_bn_relu_kernel(x_ref, w_ref, scale_ref, shift_ref, o_ref):
    # x_ref:     (Cin, TL)   x's native dtype (cast in-kernel if needed)
    # w_ref:     (TC, Cin)   compute dtype (raw conv weight)
    # scale_ref: (TC, 1)     f32 BN scale
    # shift_ref: (TC, 1)     f32 folded shift (conv bias + BN mean/beta)
    # o_ref:     (TC, TL)    output dtype
    x = x_ref[...]
    if x.dtype != w_ref.dtype:
        x = x.astype(w_ref.dtype)          # cast in VMEM: no extra HBM pass
    z = jnp.dot(w_ref[...], x, preferred_element_type=jnp.float32)   # MXU
    y = z * scale_ref[...] + shift_ref[...]                          # BN affine (f32)
    o_ref[...] = jnp.maximum(y, 0.0).astype(o_ref.dtype)             # ReLU + cast


def _round_up(x, m):
    return (x + m - 1) // m * m


def _largest_divisor_tile(total, multiple, cap):
    """Largest divisor of `total` that is a multiple of `multiple` and <= cap."""
    best = multiple
    d = multiple
    cap = min(cap, total)
    while d <= cap:
        if total % d == 0:
            best = d
        d += multiple
    return best


def conv_bn_relu_1d(x, weight, bias, gamma, beta, running_mean, running_var,
                    eps=1e-5, compute_dtype=jnp.bfloat16, out_dtype=None,
                    max_tl=2048):
    """x: (B, Cin, L). weight: (Cout, Cin, 1). Returns (B, Cout, L)."""
    B, Cin, L = x.shape
    Cout = weight.shape[0]
    out_dtype = jnp.dtype(x.dtype if out_dtype is None else out_dtype)
    compute_dtype = jnp.dtype(compute_dtype)
    x_bytes = jnp.dtype(x.dtype).itemsize
    w_bytes = compute_dtype.itemsize
    o_bytes = out_dtype.itemsize

    # ---- Fold BN (eval mode) into per-output-channel f32 scale & shift ----
    scale = gamma.astype(jnp.float32) / jnp.sqrt(
        running_var.astype(jnp.float32) + eps)                          # (Cout,)
    shift = (bias.astype(jnp.float32)
             - running_mean.astype(jnp.float32)) * scale + beta.astype(jnp.float32)

    # ---- Output-channel padding: sublane multiple only (16 for 2B outputs) ----
    sub = 16 if o_bytes == 2 else 8
    Cout_pad = _round_up(Cout, sub)

    # ---- L tiling: full-L block (no pad) when it fits, else 128-aligned ----
    if L <= max_tl and Cin * L * x_bytes <= 8 * 1024 * 1024:
        L_pad, TL = L, L
    else:
        L_pad = _round_up(L, 128)
        TL = _largest_divisor_tile(L_pad, 128, max_tl)
        while Cin * TL * x_bytes > 8 * 1024 * 1024 and TL % 256 == 0:
            TL //= 2

    # ---- Cout tiling: whole weight VMEM-resident unless working set too big ----
    def step_bytes(tc, tl):  # double-buffered per-step working set estimate
        return 2 * (Cin * tl * x_bytes + tc * Cin * w_bytes
                    + tc * tl * o_bytes + 2 * tc * 4)

    budget = 32 * 1024 * 1024
    TC = Cout_pad
    while step_bytes(TC, TL) > budget and TC > sub:
        TC = _largest_divisor_tile(Cout_pad, sub, max(TC - sub, sub))
    while step_bytes(TC, TL) > budget and TL % 256 == 0:
        TL //= 2

    # ---- v7x megacore: ensure at least 2 parallel grid steps ----
    if B * (Cout_pad // TC) * (L_pad // TL) == 1:
        if Cout_pad % (2 * sub) == 0:
            TC = Cout_pad // 2
        elif L_pad % 256 == 0:
            TL = L_pad // 2

    # ---- Small parameter tensors (x is NOT copied unless L needs padding) ----
    w2d = weight.reshape(Cout, Cin).astype(compute_dtype)
    if Cout_pad != Cout:
        w2d = jnp.pad(w2d, ((0, Cout_pad - Cout), (0, 0)))
        scale = jnp.pad(scale, ((0, Cout_pad - Cout),))
        shift = jnp.pad(shift, ((0, Cout_pad - Cout),))
    scale = scale.reshape(Cout_pad, 1).astype(jnp.float32)
    shift = shift.reshape(Cout_pad, 1).astype(jnp.float32)

    x_p = x
    if L_pad != L:  # only when L > max_tl and not already 128-aligned
        x_p = jnp.pad(x, ((0, 0), (0, 0), (0, L_pad - L)))

    grid = (B, Cout_pad // TC, L_pad // TL)  # L innermost -> weight stays resident
    vmem_limit = int(min(max(32 * 1024 * 1024,
                             step_bytes(TC, TL) + 8 * 1024 * 1024),
                         48 * 1024 * 1024))

    out = pl.pallas_call(
        _conv_bn_relu_kernel,
        out_shape=jax.ShapeDtypeStruct((B, Cout_pad, L_pad), out_dtype),
        grid_spec=pltpu.PrefetchScalarGridSpec(
            num_scalar_prefetch=0,
            grid=grid,
            in_specs=[
                # x: batch squeezed; full Cin contraction; TL lane tile.
                pl.BlockSpec((None, Cin, TL), lambda b, j, l: (b, 0, l)),
                # conv weight: depends only on the Cout tile -> resident across L, B.
                pl.BlockSpec((TC, Cin), lambda b, j, l: (j, 0)),
                # per-channel BN scale & shift (f32).
                pl.BlockSpec((TC, 1), lambda b, j, l: (j, 0)),
                pl.BlockSpec((TC, 1), lambda b, j, l: (j, 0)),
            ],
            out_specs=pl.BlockSpec((None, TC, TL), lambda b, j, l: (b, j, l)),
        ),
        compiler_params=pltpu.CompilerParams(
            dimension_semantics=("parallel", "parallel", "parallel"),
            vmem_limit_bytes=vmem_limit),
    )(x_p, w2d, scale, shift)

    if Cout_pad != Cout or L_pad != L:
        out = out[:, :Cout, :L]
    return out


def _reference(x, weight, bias, gamma, beta, running_mean, running_var, eps=1e-5):
    w2d = weight.reshape(weight.shape[0], weight.shape[1]).astype(jnp.float32)
    z = jnp.einsum("oc,bcl->bol", w2d, x.astype(jnp.float32)) + bias[None, :, None]
    zn = (z - running_mean[None, :, None]) / jnp.sqrt(
        running_var[None, :, None] + eps)
    y = gamma[None, :, None] * zn + beta[None, :, None]
    return jnp.maximum(y, 0.0)


def _make_params(key, Cin, Cout):
    k_w, k_b, k_g, k_bt, k_m, k_v = jax.random.split(key, 6)
    weight = jax.random.normal(k_w, (Cout, Cin, 1), dtype=jnp.float32) * 0.5
    bias = jax.random.normal(k_b, (Cout,), dtype=jnp.float32) * 0.1
    gamma = 1.0 + 0.1 * jax.random.normal(k_g, (Cout,), dtype=jnp.float32)
    beta = 0.1 * jax.random.normal(k_bt, (Cout,), dtype=jnp.float32)
    running_mean = 0.1 * jax.random.normal(k_m, (Cout,), dtype=jnp.float32)
    running_var = jnp.abs(
        1.0 + 0.1 * jax.random.normal(k_v, (Cout,), dtype=jnp.float32))
    return weight, bias, gamma, beta, running_mean, running_var


if __name__ == "__main__":
    key = jax.random.PRNGKey(0)

    # ---- Test 1: small shapes, f32 compute, f32 out (tight tolerance) ----
    B, Cin, Cout, L = 2, 4, 8, 16
    k_x, k_p, key = jax.random.split(key, 3)
    x = jax.random.normal(k_x, (B, Cin, L), dtype=jnp.float32)
    params = _make_params(k_p, Cin, Cout)

    out = jax.block_until_ready(
        conv_bn_relu_1d(x, *params, compute_dtype=jnp.float32))
    ref = _reference(x, *params)
    assert out.shape == (B, Cout, L)
    assert jnp.allclose(out, ref, atol=1e-5, rtol=1e-5), \
        f"f32 max err {jnp.max(jnp.abs(out - ref))}"

    # ---- Test 2: bf16 compute path, f32 out (looser tolerance) ----
    out_bf = jax.block_until_ready(
        conv_bn_relu_1d(x, *params, compute_dtype=jnp.bfloat16))
    assert out_bf.shape == (B, Cout, L)
    assert jnp.allclose(out_bf, ref, atol=5e-2, rtol=5e-2), \
        f"bf16 max err {jnp.max(jnp.abs(out_bf - ref))}"

    # ---- Test 3: forced L tiling + 128-padding (L=700, max_tl=256) ----
    B2, Cin2, Cout2, L2 = 2, 8, 16, 700
    k_x2, k_p2, key = jax.random.split(key, 3)
    x2 = jax.random.normal(k_x2, (B2, Cin2, L2), dtype=jnp.float32)
    params2 = _make_params(k_p2, Cin2, Cout2)

    out2 = jax.block_until_ready(
        conv_bn_relu_1d(x2, *params2, compute_dtype=jnp.float32, max_tl=256))
    ref2 = _reference(x2, *params2)
    assert out2.shape == (B2, Cout2, L2)
    assert jnp.allclose(out2, ref2, atol=1e-5, rtol=1e-5), \
        f"tiled f32 max err {jnp.max(jnp.abs(out2 - ref2))}"

    # ---- Test 4: bf16 compute with bf16 output (narrow-output path) ----
    out3 = jax.block_until_ready(
        conv_bn_relu_1d(x2, *params2, compute_dtype=jnp.bfloat16,
                        out_dtype=jnp.bfloat16))
    assert out3.shape == (B2, Cout2, L2)
    assert out3.dtype == jnp.bfloat16
    assert jnp.allclose(out3.astype(jnp.float32), ref2, atol=1e-1, rtol=5e-2), \
        f"bf16-out max err {jnp.max(jnp.abs(out3.astype(jnp.float32) - ref2))}"

    print("KERNEL_OK")
</pallas_src>

<mosaic_0001>
module attributes {stable_mosaic.version = 11 : i64} {
  func.func @_conv_bn_relu_kernel(%arg0: i32, %arg1: i32, %arg2: i32, %arg3: memref<1x4x16xf32, #tpu.memory_space<vmem>>, %arg4: memref<8x4xf32, #tpu.memory_space<vmem>>, %arg5: memref<8x1xf32, #tpu.memory_space<vmem>>, %arg6: memref<8x1xf32, #tpu.memory_space<vmem>>, %arg7: memref<1x8x16xf32, #tpu.memory_space<vmem>>) attributes {dimension_semantics = [#tpu.dimension_semantics<parallel>, #tpu.dimension_semantics<parallel>, #tpu.dimension_semantics<parallel>], iteration_bounds = array<i64: 2, 1, 1>, scalar_prefetch = 0 : i64, scratch_operands = 0 : i64, tpu.core_type = #tpu.core_type<tc>, window_params = [{transform_indices = @transform_0, window_bounds = array<i64: 1, 4, 16>}, {transform_indices = @transform_1, window_bounds = array<i64: 8, 4>}, {transform_indices = @transform_2, window_bounds = array<i64: 8, 1>}, {transform_indices = @transform_3, window_bounds = array<i64: 8, 1>}, {transform_indices = @transform_4, window_bounds = array<i64: 1, 8, 16>}]} {
    %c0 = arith.constant 0 : index
    %c0_0 = arith.constant 0 : index
    %c0_1 = arith.constant 0 : index
    %0 = vector.load %arg3[%c0, %c0_0, %c0_1] : memref<1x4x16xf32, #tpu.memory_space<vmem>>, vector<1x4x16xf32>
    %1 = vector.shape_cast %0 : vector<1x4x16xf32> to vector<4x16xf32>
    %c0_2 = arith.constant 0 : index
    %c0_3 = arith.constant 0 : index
    %2 = vector.load %arg4[%c0_2, %c0_3] : memref<8x4xf32, #tpu.memory_space<vmem>>, vector<8x4xf32>
    %cst = arith.constant dense<0.000000e+00> : vector<8x16xf32>
    %3 = tpu.matmul %2, %1, %cst {dimension_numbers = #tpu.dot_dimension_numbers<[1], [0], [0], [1], [0, 0, 1, 1], [], []>} : vector<8x4xf32>, vector<4x16xf32>, vector<8x16xf32> -> vector<8x16xf32>
    %c0_4 = arith.constant 0 : index
    %c0_5 = arith.constant 0 : index
    %4 = vector.load %arg5[%c0_4, %c0_5] : memref<8x1xf32, #tpu.memory_space<vmem>>, vector<8x1xf32>
    %5 = vector.broadcast %4 : vector<8x1xf32> to vector<8x16xf32>
    %6 = arith.mulf %3, %5 : vector<8x16xf32>
    %c0_6 = arith.constant 0 : index
    %c0_7 = arith.constant 0 : index
    %7 = vector.load %arg6[%c0_6, %c0_7] : memref<8x1xf32, #tpu.memory_space<vmem>>, vector<8x1xf32>
    %8 = vector.broadcast %7 : vector<8x1xf32> to vector<8x16xf32>
    %9 = arith.addf %6, %8 : vector<8x16xf32>
    %cst_8 = arith.constant 0.000000e+00 : f32
    %10 = vector.broadcast %cst_8 : f32 to vector<8x16xf32>
    %11 = arith.maximumf %9, %10 : vector<8x16xf32>
    %c0_9 = arith.constant 0 : index
    %c0_10 = arith.constant 0 : index
    %c0_11 = arith.constant 0 : index
    %12 = vector.load %arg7[%c0_9, %c0_10, %c0_11] : memref<1x8x16xf32, #tpu.memory_space<vmem>>, vector<1x8x16xf32>
    %13 = vector.shape_cast %12 : vector<1x8x16xf32> to vector<8x16xf32>
    %14 = vector.shape_cast %11 : vector<8x16xf32> to vector<1x8x16xf32>
    tpu.vector_store %arg7[%c0_9, %c0_10, %c0_11], %14 {strides = array<i32>} : memref<1x8x16xf32, #tpu.memory_space<vmem>>, vector<1x8x16xf32>,
    return
  }
  func.func @transform_0(%arg0: i32, %arg1: i32, %arg2: i32) -> (i32, i32, i32) {
    %c0_i32 = arith.constant 0 : i32
    %c0_i32_0 = arith.constant 0 : i32
    return %arg0, %c0_i32, %arg2 : i32, i32, i32
  }
  func.func @transform_1(%arg0: i32, %arg1: i32, %arg2: i32) -> (i32, i32) {
    %c0_i32 = arith.constant 0 : i32
    %c0_i32_0 = arith.constant 0 : i32
    return %arg1, %c0_i32 : i32, i32
  }
  func.func @transform_2(%arg0: i32, %arg1: i32, %arg2: i32) -> (i32, i32) {
    %c0_i32 = arith.constant 0 : i32
    %c0_i32_0 = arith.constant 0 : i32
    return %arg1, %c0_i32 : i32, i32
  }
  func.func @transform_3(%arg0: i32, %arg1: i32, %arg2: i32) -> (i32, i32) {
    %c0_i32 = arith.constant 0 : i32
    %c0_i32_0 = arith.constant 0 : i32
    return %arg1, %c0_i32 : i32, i32
  }
  func.func @transform_4(%arg0: i32, %arg1: i32, %arg2: i32) -> (i32, i32, i32) {
    %c0_i32 = arith.constant 0 : i32
    return %arg0, %arg1, %arg2 : i32, i32, i32
  }
}

</mosaic_0001>

<llo_original>
// kernel: tpu_custom_call.1
$region0: #{tpu_custom_call.1}
  #allocation0 [shape = 'u32[]', space=smem, size = 0x4, offset = 0x4, fixed_abs, tag = 'smem constant byte address 0x4 - core index']
  #allocation1 [shape = 'u32[144,128]{1,0:T(1,128)}', space=vmem, size = 0x12000, scoped, tag = 'internal scratch']
  %s0 = inlined_call_operand.vmem [shape: f32[2,4,16], index: 0, kind: input, shape index: {}]
  %s1 = inlined_call_operand.vmem [shape: f32[8,4], index: 1, kind: input, shape index: {}]
  %s2 = inlined_call_operand.vmem [shape: f32[8,1], index: 2, kind: input, shape index: {}]
  %s3 = inlined_call_operand.vmem [shape: f32[8,1], index: 3, kind: input, shape index: {}]
  %s4 = inlined_call_operand.hbm [shape: f32[2,8,16], index: 4, kind: output, shape index: {}]
  %s5 = sld [smem:[#allocation0]]
  $region49: #{tpu_custom_call.1} parent=0
    _
  %s7 = ssub.s32 1, %s5
  %s8 = scalar_select 0, %s7, %s5
  $region1: #{tpu_custom_call.1} parent=0
    #allocation2 [shape = 'u8[8192]{0}', space=vmem, size = 0x2000, scoped, tag = 'output window, operand 0']
    #allocation3 [shape = 's32[2]{0}', space=sflag, size = 0x8, scoped, tag = 'scoped memory for tpu_custom_call.1']
    %9 = vsyncpa [#allocation3], 0
    %s10 = scalar_lea.sflag [#allocation3], 1
    %11 = vsyncpa %s10, 0
    loop: start=0, step=1, limit=4
    $region2: #{tpu_custom_call.1} parent=1 // loop_pre_header
      _
    $region3: #{tpu_custom_call.1} parent=1 // loop_header
      %s13 = sphi 0, %s17
      %p14 = scmp.ge.s32.totalorder %s13, 4
      %s20 = sphi 0, %s39
      %s21 = sphi 0, %s35
      %s22 = sphi 0, %s31
      %s23 = sphi 0, %s20
      %s24 = sphi 0, %s21
      %s25 = sphi 0, %s22
      %s26 = sphi 0, %s23
      %s27 = sphi 0, %s24
      %s28 = sphi 0, %s25
      %s44 = sphi 0, %s46
      %s47 = sphi 0, %s44
      %s48 = sphi 0, %s47
      %s64 = sphi 0, %s48
      %s70 = sphi 0, %s72
      %s73 = sphi 0, %s70
      %s74 = sphi 0, %s73
      %s90 = sphi 0, %s74
      %s96 = sphi 0, %s98
      %s99 = sphi 0, %s96
      %s100 = sphi 0, %s99
      %s116 = sphi 0, %s100
      %s122 = sphi 0, %s124
      %s125 = sphi 0, %s122
      %s126 = sphi 0, %s125
      %s142 = sphi 0, %s126
      %s152 = sphi 0, %s154
      %s155 = sphi 0, %s152
      %s156 = sphi 0, %s155
      %s172 = sphi 0, %s156
    $region4: #{tpu_custom_call.1} parent=1 // loop_header_branch
      %16 = sbr.rel (%p14) target = $region8
    $region5: #{tpu_custom_call.1} parent=1 // loop_body
      %s18 = ssub.s32 %s13, 1
      %s19 = ssub.s32 %s13, 2
      %s29 = sadd.s32 1, %s22
      %p30 = scmp.ge.s32.totalorder %s29, 1
      %s31 = scalar_select %p30, 0, %s29
      %s32 = sadd.s32 1, %s21
      %s33 = scalar_select %p30, %s32, %s21
      %p34 = scmp.ge.s32.totalorder %s33, 1
      %s35 = scalar_select %p34, 0, %s33
      %s36 = sadd.s32 1, %s20
      %s37 = scalar_select %p34, %s36, %s20
      %p38 = scmp.ge.s32.totalorder %s37, 2
      %s39 = scalar_select %p38, 0, %s37
      %s40 = ssub.s32 %s20, %s39
      %s41 = ssub.s32 %s22, %s31
      %s42 = sor.u32 %s40, %s41
      %p43 = scmp.eq.s32.totalorder %s42, 0
      %s45 = sadd.s32 %s44, 1
      %s46 = scalar_select %p43, %s44, %s45
      %p49 = pneg %p43
      %p50 = scmp.eq.s32.totalorder %s13, 1
      %p51 = por %p49, %p50
      %p52 = scmp.ne.s32.totalorder %s44, %s47
      %p53 = scmp.eq.s32.totalorder %s13, 0
      %p54 = por %p52, %p53
      %p55 = scmp.ne.s32.totalorder %s44, %s47
      %p56 = scmp.eq.s32.totalorder %s18, 1
      %p57 = por %p55, %p56
      %p58 = scmp.ne.s32.totalorder %s47, %s48
      %p59 = scmp.eq.s32.totalorder %s18, 0
      %p60 = por %p58, %p59
      %p61 = scmp.ne.s32.totalorder %s47, %s48
      %p62 = scmp.eq.s32.totalorder %s19, 1
      %p63 = por %p61, %p62
      %p65 = scmp.ne.s32.totalorder %s48, %s64
      %p66 = scmp.eq.s32.totalorder %s19, 0
      %p67 = por %p65, %p66
      %s68 = ssub.s32 %s21, %s35
      %p69 = scmp.eq.s32.totalorder %s68, 0
      %s71 = sadd.s32 %s70, 1
      %s72 = scalar_select %p69, %s70, %s71
      %p75 = pneg %p69
      %p76 = scmp.eq.s32.totalorder %s13, 1
      %p77 = por %p75, %p76
      %p78 = scmp.ne.s32.totalorder %s70, %s73
      %p79 = scmp.eq.s32.totalorder %s13, 0
      %p80 = por %p78, %p79
      %p81 = scmp.ne.s32.totalorder %s70, %s73
      %p82 = scmp.eq.s32.totalorder %s18, 1
      %p83 = por %p81, %p82
      %p84 = scmp.ne.s32.totalorder %s73, %s74
      %p85 = scmp.eq.s32.totalorder %s18, 0
      %p86 = por %p84, %p85
      %p87 = scmp.ne.s32.totalorder %s73, %s74
      %p88 = scmp.eq.s32.totalorder %s19, 1
      %p89 = por %p87, %p88
      %p91 = scmp.ne.s32.totalorder %s74, %s90
      %p92 = scmp.eq.s32.totalorder %s19, 0
      %p93 = por %p91, %p92
      %s94 = ssub.s32 %s21, %s35
      %p95 = scmp.eq.s32.totalorder %s94, 0
      %s97 = sadd.s32 %s96, 1
      %s98 = scalar_select %p95, %s96, %s97
      %p101 = pneg %p95
      %p102 = scmp.eq.s32.totalorder %s13, 1
      %p103 = por %p101, %p102
      %p104 = scmp.ne.s32.totalorder %s96, %s99
      %p105 = scmp.eq.s32.totalorder %s13, 0
      %p106 = por %p104, %p105
      %p107 = scmp.ne.s32.totalorder %s96, %s99
      %p108 = scmp.eq.s32.totalorder %s18, 1
      %p109 = por %p107, %p108
      %p110 = scmp.ne.s32.totalorder %s99, %s100
      %p111 = scmp.eq.s32.totalorder %s18, 0
      %p112 = por %p110, %p111
      %p113 = scmp.ne.s32.totalorder %s99, %s100
      %p114 = scmp.eq.s32.totalorder %s19, 1
      %p115 = por %p113, %p114
      %p117 = scmp.ne.s32.totalorder %s100, %s116
      %p118 = scmp.eq.s32.totalorder %s19, 0
      %p119 = por %p117, %p118
      %s120 = ssub.s32 %s21, %s35
      %p121 = scmp.eq.s32.totalorder %s120, 0
      %s123 = sadd.s32 %s122, 1
      %s124 = scalar_select %p121, %s122, %s123
      %p127 = pneg %p121
      %p128 = scmp.eq.s32.totalorder %s13, 1
      %p129 = por %p127, %p128
      %p130 = scmp.ne.s32.totalorder %s122, %s125
      %p131 = scmp.eq.s32.totalorder %s13, 0
      %p132 = por %p130, %p131
      %p133 = scmp.ne.s32.totalorder %s122, %s125
      %p134 = scmp.eq.s32.totalorder %s18, 1
      %p135 = por %p133, %p134
      %p136 = scmp.ne.s32.totalorder %s125, %s126
      %p137 = scmp.eq.s32.totalorder %s18, 0
      %p138 = por %p136, %p137
      %p139 = scmp.ne.s32.totalorder %s125, %s126
      %p140 = scmp.eq.s32.totalorder %s19, 1
      %p141 = por %p139, %p140
      %p143 = scmp.ne.s32.totalorder %s126, %s142
      %p144 = scmp.eq.s32.totalorder %s19, 0
      %p145 = por %p143, %p144
      %s146 = ssub.s32 %s20, %s39
      %s147 = ssub.s32 %s21, %s35
      %s148 = sor.u32 %s146, %s147
      %s149 = ssub.s32 %s22, %s31
      %s150 = sor.u32 %s148, %s149
      %p151 = scmp.eq.s32.totalorder %s150, 0
      %s153 = sadd.s32 %s152, 1
      %s154 = scalar_select %p151, %s152, %s153
      %p157 = pneg %p151
      %p158 = scmp.eq.s32.totalorder %s13, 1
      %p159 = por %p157, %p158
      %p160 = scmp.ne.s32.totalorder %s152, %s155
      %p161 = scmp.eq.s32.totalorder %s13, 0
      %p162 = por %p160, %p161
      %p163 = scmp.ne.s32.totalorder %s152, %s155
      %p164 = scmp.eq.s32.totalorder %s18, 1
      %p165 = por %p163, %p164
      %p166 = scmp.ne.s32.totalorder %s155, %s156
      %p167 = scmp.eq.s32.totalorder %s18, 0
      %p168 = por %p166, %p167
      %p169 = scmp.ne.s32.totalorder %s155, %s156
      %p170 = scmp.eq.s32.totalorder %s19, 1
      %p171 = por %p169, %p170
      %p173 = scmp.ne.s32.totalorder %s156, %s172
      %p174 = scmp.eq.s32.totalorder %s19, 0
      %p175 = por %p173, %p174
      %p176 = scmp.le.s32.totalorder 1, %s13
      %p177 = scmp.lt.s32.totalorder %s13, 3
      %p178 = pnand %p176, %p177
      %p179 = pneg %p178
      // Predicated region
      $region9: #{tpu_custom_call.1} parent=5 // pred_check
        _
      $region10: #{tpu_custom_call.1} parent=5 // pred_check_branch
        %181 = sbr.rel (%p178) target = $region12
      $region11: #{tpu_custom_call.1} parent=5 // pred_region
        %s182 = ssub.s32 %s13, 1
        // Predicated region
        $region13: #{tpu_custom_call.1} parent=11 // pred_check
          %p183 = pneg %p86
        $region14: #{tpu_custom_call.1} parent=11 // pred_check_branch
          %185 = sbr.rel (%p183) target = $region16
        $region15: #{tpu_custom_call.1} parent=11 // pred_region
          %p186 = scmp.lt.s32.totalorder %s24, 0
          %s187 = scalar_select %p186, %s24, 0
          %s188 = smul.addr %s187, 8
          %s189 = scalar_lea.vmem %s1, %s188
        $region16: #{tpu_custom_call.1} parent=11 // pred_fallthru
          _
        // Predicated region
        $region17: #{tpu_custom_call.1} parent=11 // pred_check
          %p190 = pneg %p112
        $region18: #{tpu_custom_call.1} parent=11 // pred_check_branch
          %192 = sbr.rel (%p190) target = $region20
        $region19: #{tpu_custom_call.1} parent=11 // pred_region
          %p193 = scmp.lt.s32.totalorder %s24, 0
          %s194 = scalar_select %p193, %s24, 0
          %s195 = smul.addr %s194, 8
          %s196 = scalar_lea.vmem %s2, %s195
        $region20: #{tpu_custom_call.1} parent=11 // pred_fallthru
          _
        // Predicated region
        $region21: #{tpu_custom_call.1} parent=11 // pred_check
          %p197 = pneg %p138
        $region22: #{tpu_custom_call.1} parent=11 // pred_check_branch
          %199 = sbr.rel (%p197) target = $region24
        $region23: #{tpu_custom_call.1} parent=11 // pred_region
          %p200 = scmp.lt.s32.totalorder %s24, 0
          %s201 = scalar_select %p200, %s24, 0
          %s202 = smul.addr %s201, 8
          %s203 = scalar_lea.vmem %s3, %s202
        $region24: #{tpu_custom_call.1} parent=11 // pred_fallthru
          _
      $region12: #{tpu_custom_call.1} parent=5 // pred_fallthru
        _
      %p204 = scmp.lt.s32.totalorder %s13, 2
      // Predicated region
      $region25: #{tpu_custom_call.1} parent=5 // pred_check
        %p205 = pneg %p204
      $region26: #{tpu_custom_call.1} parent=5 // pred_check_branch
        %207 = sbr.rel (%p205) target = $region28
      $region27: #{tpu_custom_call.1} parent=5 // pred_region
        // Predicated region
        $region29: #{tpu_custom_call.1} parent=27 // pred_check
          %p208 = pneg %p54
        $region30: #{tpu_custom_call.1} parent=27 // pred_check_branch
          %210 = sbr.rel (%p208) target = $region32
        $region31: #{tpu_custom_call.1} parent=27 // pred_region
          %p211 = scmp.lt.s32.totalorder %s20, 1
          %s212 = scalar_select %p211, %s20, 1
          %p213 = scmp.lt.s32.totalorder %s22, 0
          %s214 = scalar_select %p213, %s22, 0
          %s215 = sadd.s32 %s214, %s212
          %s216 = smul.addr %s215, 4
          %s217 = scalar_lea.vmem %s0, %s216
        $region32: #{tpu_custom_call.1} parent=27 // pred_fallthru
          _
      $region28: #{tpu_custom_call.1} parent=5 // pred_fallthru
        _
      %p218 = scmp.le.s32.totalorder 1, %s13
      %p219 = scmp.lt.s32.totalorder %s13, 3
      %p220 = pnand %p218, %p219
      %p221 = pneg %p220
      // Predicated region
      $region33: #{tpu_custom_call.1} parent=5 // pred_check
        _
      $region34: #{tpu_custom_call.1} parent=5 // pred_check_branch
        %223 = sbr.rel (%p220) target = $region36
      $region35: #{tpu_custom_call.1} parent=5 // pred_region
        %s224 = ssub.s32 %s13, 1
        %p225 = scmp.lt.s32.totalorder %s23, 1
        %s226 = scalar_select %p225, %s23, 1
        %p227 = scmp.lt.s32.totalorder %s25, 0
        %s228 = scalar_select %p227, %s25, 0
        %s229 = sadd.s32 %s228, %s226
        %s230 = smul.addr %s229, 4
        %s231 = scalar_lea.vmem %s0, %s230
        %p232 = pneg %p60
        %p233 = pneg %p57
        %p234 = scmp.lt.s32.totalorder %s24, 0
        %s235 = scalar_select %p234, %s24, 0
        %s236 = smul.addr %s235, 8
        %s237 = scalar_lea.vmem %s1, %s236
        %p238 = pneg %p86
        %p239 = pneg %p83
        %p240 = scmp.lt.s32.totalorder %s24, 0
        %s241 = scalar_select %p240, %s24, 0
        %s242 = smul.addr %s241, 8
        %s243 = scalar_lea.vmem %s2, %s242
        %p244 = pneg %p112
        %p245 = pneg %p109
        %p246 = scmp.lt.s32.totalorder %s24, 0
        %s247 = scalar_select %p246, %s24, 0
        %s248 = smul.addr %s247, 8
        %s249 = scalar_lea.vmem %s3, %s248
        %p250 = pneg %p138
        %p251 = pneg %p135
        %p252 = pneg %p168
        %p253 = pneg %p165
        %s254 = sand.u32 %s155, 1
        %s255 = scalar_lea.sflag [#allocation3], %s254
        %s256 = sand.u32 %s155, 1
        %s257 = smul.addr %s256, 8
        %s258 = scalar_lea.vmem [#allocation2], %s257
        %p259 = scmp.lt.s32.totalorder %s23, 1
        %s260 = scalar_select %p259, %s23, 1
        %p261 = scmp.lt.s32.totalorder %s25, 0
        %s262 = scalar_select %p261, %s25, 0
        %s263 = sadd.s32 %s262, %s260
        %s264 = smul.addr %s263, 4
        %s265 = scalar_lea.vmem %s0, %s264
        %p266 = scmp.lt.s32.totalorder %s24, 0
        %s267 = scalar_select %p266, %s24, 0
        %s268 = smul.addr %s267, 8
        %s269 = scalar_lea.vmem %s1, %s268
        %p270 = scmp.lt.s32.totalorder %s24, 0
        %s271 = scalar_select %p270, %s24, 0
        %s272 = smul.addr %s271, 8
        %s273 = scalar_lea.vmem %s2, %s272
        %p274 = scmp.lt.s32.totalorder %s24, 0
        %s275 = scalar_select %p274, %s24, 0
        %s276 = smul.addr %s275, 8
        %s277 = scalar_lea.vmem %s3, %s276
        %v278 = vld [vmem:[%s265] sm:$0xf]
        %v279 = vld [vmem:[%s269] sm:$0xff]
        %vm280 = vcmask 31744
        %v282 = vsel %vm280, %v279, 0
        %vm284 = vcmask 1043456
        %v286 = vsel %vm284, %v278, 0
        %288 = vmatprep.subr.mxu0 0.0
        %289 = vmatpush1.msra.mxu0 %v286
        %290 = vmatprep.subr.mxu0 0.0
        %291 = vmatpush1.msra.mxu0 0.0
        %292 = vmatprep.subr.mxu0 0.0
        %293 = vmatpush1.msra.mxu0 0.0
        %294 = vmatprep.subr.mxu0 0.0
        %295 = vmatpush1.msra.mxu0 0.0
        %296 = vmatprep.subr.mxu0 0.0
        %297 = vmatpush1.msra.mxu0 0.0
        %298 = vmatprep.subr.mxu0 0.0
        %299 = vmatpush1.msra.mxu0 0.0
        %300 = vmatprep.subr.mxu0 0.0
        %301 = vmatpush1.msra.mxu0 0.0
        %302 = vmatprep.subr.mxu0 0.0
        %303 = vmatpush1.msra.mxu0 0.0
        %304 = vmatprep.subr.mxu0 0.0
        %305 = vmatpush1.msra.mxu0 0.0
        %306 = vmatprep.subr.mxu0 0.0
        %307 = vmatpush1.msra.mxu0 0.0
        %308 = vmatprep.subr.mxu0 0.0
        %309 = vmatpush1.msra.mxu0 0.0
        %310 = vmatprep.subr.mxu0 0.0
        %311 = vmatpush1.msra.mxu0 0.0
        %312 = vmatprep.subr.mxu0 0.0
        %313 = vmatpush1.msra.mxu0 0.0
        %314 = vmatprep.subr.mxu0 0.0
        %315 = vmatpush1.msra.mxu0 0.0
        %316 = vmatprep.subr.mxu0 0.0
        %317 = vmatpush1.msra.mxu0 0.0
        %318 = vmatprep.subr.mxu0 0.0
        %319 = vmatpush1.msra.mxu0 0.0
        %320 = vmatprep.subr.mxu0 0.0
        %321 = vmatpush1.msra.mxu0 0.0
        %322 = vmatprep.subr.mxu0 0.0
        %323 = vmatpush1.msra.mxu0 0.0
        %324 = vmatprep.subr.mxu0 0.0
        %325 = vmatpush1.msra.mxu0 0.0
        %326 = vmatprep.subr.mxu0 0.0
        %327 = vmatpush1.msra.mxu0 0.0
        %328 = vmatprep.subr.mxu0 0.0
        %329 = vmatpush1.msra.mxu0 0.0
        %330 = vmatprep.subr.mxu0 0.0
        %331 = vmatpush1.msra.mxu0 0.0
        %332 = vmatprep.subr.mxu0 0.0
        %333 = vmatpush1.msra.mxu0 0.0
        %334 = vmatprep.subr.mxu0 0.0
        %335 = vmatpush1.msra.mxu0 0.0
        %336 = vmatprep.subr.mxu0 0.0
        %337 = vmatpush1.msra.mxu0 0.0
        %338 = vmatprep.subr.mxu0 0.0
        %339 = vmatpush1.msra.mxu0 0.0
        %340 = vmatprep.subr.mxu0 0.0
        %341 = vmatpush1.msra.mxu0 0.0
        %342 = vmatprep.subr.mxu0 0.0
        %343 = vmatpush1.msra.mxu0 0.0
        %344 = vmatprep.subr.mxu0 0.0
        %345 = vmatpush1.msra.mxu0 0.0
        %346 = vmatprep.subr.mxu0 0.0
        %347 = vmatpush1.msra.mxu0 0.0
        %348 = vmatprep.subr.mxu0 0.0
        %349 = vmatpush1.msra.mxu0 0.0
        %350 = vmatprep.subr.mxu0 0.0
        %351 = vmatpush1.msra.mxu0 0.0
        %352 = vmatprep.mubr.f32.mxu0 0.0
        %353 = vmatmul.mubr.f32.gmra.mrb[0].mxu0 %v282
        %v354 = vpop.f32.mrb[0].mxu0
        %v355 = vadd.f32 0.0, %v354
        %v356 = vpop.f32.mrb[0].mxu0
        %357 = vdwg.mxu0
        %v358 = vld [vmem:[%s273] sm:$0xff]
        %360 = vset.pattern.permute.xlu0 0
        %361 = vperm.xlu0 %360, %v358
        %v362 = vpop.permute.xlu0 %361
        %v364 = vmul.f32 %v355, %v362
        %v365 = vld [vmem:[%s277] sm:$0xff]
        %367 = vset.pattern.permute.xlu0 0
        %368 = vperm.xlu0 %367, %v365
        %v369 = vpop.permute.xlu0 %368
        %v371 = vadd.f32 %v364, %v369
        %v372 = vmax.f32 %v371, 0.0
        %vm373 = vcmask 130048
        %374 = vst.msk [vmem:[%s258] sm:$0xff] %vm373, %v372
        %s375 = sand.u32 %s155, 1
        %s376 = scalar_lea.sflag [#allocation3], %s375
        %s377 = sand.u32 %s155, 1
        %s378 = smul.addr %s377, 8
        %s379 = scalar_lea.vmem [#allocation2], %s378
        // Predicated region
        $region37: #{tpu_custom_call.1} parent=35 // pred_check
          %p380 = pneg %p165
        $region38: #{tpu_custom_call.1} parent=35 // pred_check_branch
          %382 = sbr.rel (%p380) target = $region40
        $region39: #{tpu_custom_call.1} parent=35 // pred_region
          %s384 = ssub.s32 128, 128
          %385 = vsyncadd %s376, %s384
          %s386 = sadd.s32 %s25, %s24
          %s387 = sadd.s32 %s386, %s23
          %s388 = smul.addr %s387, 128
          %s389 = scalar_lea.hbm %s4, %s388
          %s391 = sshll.u32 %s379, 4
          %s392 = int_to_ptr.vmem [resolvable:$true] %s391
          %394 = dma.vmem_to_hbm [thread:$0]  %s392, 128, %s389, %s376
        $region40: #{tpu_custom_call.1} parent=35 // pred_fallthru
          _
      $region36: #{tpu_custom_call.1} parent=5 // pred_fallthru
        _
      %p395 = scmp.le.s32.totalorder 2, %s13
      // Predicated region
      $region41: #{tpu_custom_call.1} parent=5 // pred_check
        %p396 = pneg %p395
      $region42: #{tpu_custom_call.1} parent=5 // pred_check_branch
        %398 = sbr.rel (%p396) target = $region44
      $region43: #{tpu_custom_call.1} parent=5 // pred_region
        %s399 = ssub.s32 %s13, 2
        // Predicated region
        $region45: #{tpu_custom_call.1} parent=43 // pred_check
          %p400 = pneg %p171
        $region46: #{tpu_custom_call.1} parent=43 // pred_check_branch
          %402 = sbr.rel (%p400) target = $region48
        $region47: #{tpu_custom_call.1} parent=43 // pred_region
          %s403 = sand.u32 %s156, 1
          %s404 = scalar_lea.sflag [#allocation3], %s403
          %s405 = sand.u32 %s156, 1
          %s406 = smul.addr %s405, 8
          %s407 = scalar_lea.vmem [#allocation2], %s406
          %408 = dma.done %s404, 128
        $region48: #{tpu_custom_call.1} parent=43 // pred_fallthru
          _
      $region44: #{tpu_custom_call.1} parent=5 // pred_fallthru
        _
    $region6: #{tpu_custom_call.1} parent=1 // loop_footer
      %s17 = sadd.s32 1, %s13
    $region7: #{tpu_custom_call.1} parent=1 // loop_footer_branch
      %12 = sbr.rel target = $region3
    $region8: #{tpu_custom_call.1} parent=1 // loop_exit
      _
    %409 = vsyncpa [#allocation3], 1
    %s410 = scalar_lea.sflag [#allocation3], 1
    %411 = vsyncpa %s410, 1

</llo_original>
